<compile_context>
chip_gen: v7x
topology: tpu7x:2x2x1
jax: 0.10.0
libtpu: 0.0.40
codegen_flags: <defaults>
</compile_context>

<pallas_src>
import functools

import numpy as np
import jax
import jax.numpy as jnp
from jax.experimental import pallas as pl
from jax.experimental.pallas import tpu as pltpu

# ----------------------------------------------------------------------------
# Module "parameters" (constant matrices from the PyTorch module __init__)
# ----------------------------------------------------------------------------
AREA_DISTANCE_MATRIX = np.array(
    [[0, 1, 2, 2, 2, 2],
     [1, 0, 1, 1, 1, 1],
     [2, 1, 0, 1, 3, 3],
     [2, 1, 1, 0, 3, 3],
     [2, 1, 3, 3, 0, 1],
     [2, 1, 3, 3, 1, 0]], dtype=np.float32)

NODE_DISTANCE_MATRIX = np.array(
    [[0, 1, 2, 2, 1, 2, 2, 2.5, 3.5, 4, 5.5, 5, 4, 2.5, 3.5, 4, 5, 3.5, 4.5, 3.5, 2.5, 2.5],
     [1, 0, 1, 3, 2, 3, 1, 1.5, 2.5, 3, 4.5, 4, 3, 1.5, 4.5, 5, 6, 4.5, 5.5, 4.5, 3.5, 3.5],
     [2, 1, 0, 2, 3, 4, 2, 2.5, 3.5, 4, 5.5, 3, 2, 0.5, 3.5, 4, 5, 3.5, 4.5, 5.5, 4.5, 2.5],
     [2, 3, 2, 0, 1, 2, 4, 4.5, 5.5, 6, 7.5, 5, 4, 2.5, 1.5, 2, 3, 1.5, 2.5, 3.5, 2.5, 0.5],
     [1, 2, 3, 1, 0, 1, 3, 3.5, 4.5, 5, 6.5, 6, 5, 3.5, 2.5, 3, 4, 2.5, 3.5, 2.5, 1.5, 1.5],
     [2, 3, 4, 2, 1, 0, 2, 2.5, 3.5, 4, 5.5, 7, 6, 4.5, 3.5, 4, 5, 3.5, 2.5, 1.5, 0.5, 2.5],
     [2, 1, 2, 4, 3, 2, 0, 0.5, 1.5, 2, 3.5, 5, 4, 2.5, 5.5, 6, 7, 5.5, 4.5, 3.5, 2.5, 4.5],
     [2.5, 1.5, 2.5, 4.5, 3.5, 2.5, 0.5, 0, 1, 1.5, 3, 3.5, 4.5, 3, 6, 6.5, 7.5, 6, 5, 4, 3, 5],
     [3.5, 2.5, 3.5, 5.5, 4.5, 3.5, 1.5, 1, 0, 0.5, 2, 2.5, 3.5, 4, 7, 7.5, 8.5, 7, 6, 5, 4, 6],
     [4, 3, 4, 6, 5, 4, 2, 1.5, 0.5, 0, 1.5, 2, 3, 4.5, 7.5, 8, 9, 7.5, 6.5, 5.5, 4.5, 6.5],
     [5.5, 4.5, 5.5, 7.5, 6.5, 5.5, 3.5, 3, 2, 1.5, 0, 0.5, 1.5, 3, 7, 7.5, 8.5, 7, 8, 7, 6, 6.5],
     [5, 4, 3, 5, 6, 7, 5, 3.5, 2.5, 2, 0.5, 0, 1, 2.5, 6.5, 7, 8, 6.5, 7.5, 7.5, 6.5, 5.5],
     [4, 3, 2, 4, 5, 6, 4, 4.5, 3.5, 3, 1.5, 1, 0, 1.5, 5.5, 6, 7, 5.5, 6.5, 7.5, 7, 4.5],
     [2.5, 1.5, 0.5, 2.5, 3.5, 4.5, 2.5, 3, 4, 4.5, 3, 2.5, 1.5, 0, 4, 4.5, 5.5, 4, 5, 6, 5.5, 3],
     [3.5, 4.5, 3.5, 1.5, 2.5, 3.5, 5.5, 6, 7, 7.5, 7, 6.5, 5.5, 4, 0, 0.5, 1.5, 0.5, 1.5, 2.5, 3.5, 1],
     [4, 5, 4, 2, 3, 4, 6, 6.5, 7.5, 8, 7.5, 7, 6, 4.5, 0.5, 0, 1, 1, 2, 3, 4, 1.5],
     [5, 6, 5, 3, 4, 5, 7, 7.5, 8.5, 9, 8.5, 8, 7, 5.5, 1.5, 1, 0, 1.5, 2.5, 3.5, 4.5, 2.5],
     [3.5, 4.5, 3.5, 1.5, 2.5, 3.5, 5.5, 6, 7, 7.5, 7, 6.5, 5.5, 4, 0.5, 1, 1.5, 0, 1, 2, 3, 1],
     [4.5, 5.5, 4.5, 2.5, 3.5, 2.5, 4.5, 5, 6, 6.5, 8, 7.5, 6.5, 5, 1.5, 2, 2.5, 1, 0, 1, 2, 2],
     [3.5, 4.5, 5.5, 3.5, 2.5, 1.5, 3.5, 4, 5, 5.5, 7, 7.5, 7.5, 6, 2.5, 3, 3.5, 2, 1, 0, 1, 3],
     [2.5, 3.5, 4.5, 2.5, 1.5, 0.5, 2.5, 3, 4, 4.5, 6, 6.5, 7, 5.5, 3.5, 4, 4.5, 3, 2, 1, 0, 3],
     [2.5, 3.5, 2.5, 0.5, 1.5, 2.5, 4.5, 5, 6, 6.5, 6.5, 5.5, 4.5, 3, 1, 1.5, 2.5, 1, 2, 3, 3, 0]],
    dtype=np.float32)

NODE_TO_AREA = np.array(
    [0, 0, 0, 0, 0, 0, 0, 1, 2, 2, 3, 3, 3, 1, 4, 4, 4, 5, 5, 5, 1, 1],
    dtype=np.int32)

NUM_CLASSES = NODE_DISTANCE_MATRIX.shape[0]  # 22


# ----------------------------------------------------------------------------
# Pallas kernel: fused CE + distance-penalty partial sum per batch tile
# ----------------------------------------------------------------------------
def _loss_kernel(logits_ref, tgt_ref, dist_ref, out_ref, *, valid_rows):
    # logits_ref : (TB, C) logits tile (native dtype; upcast here, not in HBM)
    # tgt_ref    : (TB, 1) int32 targets tile
    # dist_ref   : (C, C)  float32 combined distance matrix (VMEM-resident)
    # out_ref    : (1, 1, 1) float32 per-tile partial sum of (ce_i + penalty_i)
    logits = logits_ref[...].astype(jnp.float32)                    # (TB, C)
    tgt = tgt_ref[...]                                              # (TB, 1)
    dist = dist_ref[...]                                            # (C, C)
    tb, c = logits.shape

    # Row validity of this tile (mask padding of the final tile), folded
    # straight into the one-hot so padded rows contribute zero everywhere.
    row0 = pl.program_id(0) * tb
    row_ids = jax.lax.broadcasted_iota(jnp.int32, (tb, 1), 0) + row0
    valid_col = row_ids < valid_rows                                 # (TB, 1) bool

    # In-kernel validity-masked one-hot (no (B, C) f32 one-hot in HBM).
    class_ids = jax.lax.broadcasted_iota(jnp.int32, (tb, c), 1)      # (TB, C)
    onehot = jnp.where((class_ids == tgt) & valid_col, 1.0, 0.0)     # (TB, C) f32

    # Numerically stable softmax statistics (the only per-row reductions left).
    m = jnp.max(logits, axis=-1, keepdims=True)                      # (TB, 1)
    e = jnp.exp(logits - m)                                          # (TB, C)
    s = jnp.sum(e, axis=-1, keepdims=True)                           # (TB, 1)

    # probs without a divide: reciprocal on the EUP slot (approx ~2^-12 rel err).
    probs = e * pl.reciprocal(s, approx=True)                        # (TB, C)

    # Single long-K (K = TB) MXU contraction: G[t, j] = sum_i onehot[i,t]*probs[i,j].
    # Result is a tiny (C, C) block instead of a (TB, C) MXU drain; the whole
    # distance penalty collapses to one small elementwise reduce against dist.
    G = jax.lax.dot_general(onehot, probs, (((0,), (0,)), ((), ())),
                            preferred_element_type=jnp.float32)      # (C, C)
    pen_sum = jnp.sum(G * dist)                                      # scalar

    # Target-logit gather as a full 2-D masked reduce: one VALU mul + accumulate
    # per vreg, a single final cross-lane reduce (no per-row lane reductions).
    logit_t_sum = jnp.sum(onehot * logits)                           # scalar

    # sum_i valid_i * logsumexp_i on the narrow (TB, 1) column.
    lse_sum = jnp.sum(jnp.where(valid_col, jnp.log(s) + m, 0.0))     # scalar

    tile_sum = lse_sum - logit_t_sum + pen_sum                       # sum(ce + pen)
    out_ref[...] = tile_sum.reshape(1, 1, 1).astype(out_ref.dtype)


def _round_up(x, m):
    return (x + m - 1) // m * m


def distance_penalty_loss(logits, targets, node_distance_matrix,
                          area_distance_matrix, node_to_area,
                          alpha=1.0, beta=1.0, max_block=4096):
    """JAX/Pallas equivalent of DistancePenaltyLoss.forward."""
    B, C = logits.shape
    assert C == node_distance_matrix.shape[0]

    # Parameter glue: fold alpha/beta into a single (C, C) distance matrix
    # (the penalty is linear in the matrix, so this is exact).
    area_per_node = area_distance_matrix[node_to_area][:, node_to_area]   # (C, C)
    combined = (alpha * node_distance_matrix
                + beta * area_per_node).astype(jnp.float32)               # (C, C)

    # Batch tiling:
    #  * TB multiple of 8 (sublane granularity).
    #  * TB <= ceil(B/2): the "parallel" batch axis always has >= 2 tiles, so
    #    both v7x TensorCores get work (no-op on single-TC v5e/v6e).
    #  * TB <= max_block=4096: logits (512*TB B) + targets (512*TB B) double
    #    buffers stay ~8 MiB, inside even v5e's 16 MiB default scoped VMEM.
    tb = max(8, min(max_block, _round_up(pl.cdiv(B, 2), 8)))
    num_tiles = pl.cdiv(B, tb)
    b_pad = num_tiles * tb
    if b_pad != B:
        logits = jnp.pad(logits, ((0, b_pad - B), (0, 0)))
        targets = jnp.pad(targets, (0, b_pad - B))
    tgt2d = targets.astype(jnp.int32).reshape(b_pad, 1)

    kernel = functools.partial(_loss_kernel, valid_rows=B)

    partial_sums = pl.pallas_call(
        kernel,
        out_shape=jax.ShapeDtypeStruct((num_tiles, 1, 1), jnp.float32),
        grid=(num_tiles,),
        in_specs=[
            pl.BlockSpec((tb, C), lambda i: (i, 0)),   # logits tile (native dtype)
            pl.BlockSpec((tb, 1), lambda i: (i, 0)),   # int32 targets tile
            pl.BlockSpec((C, C), lambda i: (0, 0)),    # resident distance matrix
        ],
        out_specs=pl.BlockSpec((1, 1, 1), lambda i: (i, 0, 0)),
        compiler_params=pltpu.CompilerParams(
            dimension_semantics=("parallel",)),
    )(logits, tgt2d, combined)

    # Tiny final reduction in the wrapper: sum(ce_i + penalty_i) / B equals
    # mean(ce) + alpha*mean(node_pen) + beta*mean(area_pen) with the folded matrix.
    return jnp.sum(partial_sums) / B


# ----------------------------------------------------------------------------
# Pure-JAX reference (mirrors the PyTorch loop semantics) for validation.
# ----------------------------------------------------------------------------
def _reference_loss(logits, targets, node_dist, area_dist, node_to_area,
                    alpha=1.0, beta=1.0):
    logits = logits.astype(jnp.float32)
    logprobs = jax.nn.log_softmax(logits, axis=1)
    ce = -jnp.mean(jnp.take_along_axis(logprobs, targets[:, None], axis=1))
    probs = jax.nn.softmax(logits, axis=1)
    node_rows = node_dist[targets]                                   # (B, C)
    node_pen = jnp.mean(jnp.sum(probs * node_rows, axis=1))
    area_rows = area_dist[node_to_area[targets]][:, node_to_area]    # (B, C)
    area_pen = jnp.mean(jnp.sum(probs * area_rows, axis=1))
    return ce + alpha * node_pen + beta * area_pen


if __name__ == "__main__":
    key = jax.random.PRNGKey(0)
    k_logits, k_targets = jax.random.split(key)

    B = 16  # batch_size from the reference script
    logits = jax.random.normal(k_logits, (B, NUM_CLASSES), dtype=jnp.float32)
    targets = jax.random.randint(k_targets, (B,), 0, NUM_CLASSES, dtype=jnp.int32)

    node_dist = jnp.asarray(NODE_DISTANCE_MATRIX)
    area_dist = jnp.asarray(AREA_DISTANCE_MATRIX)
    node_to_area = jnp.asarray(NODE_TO_AREA)

    loss = distance_penalty_loss(logits, targets, node_dist, area_dist,
                                 node_to_area, alpha=1.0, beta=1.0)
    loss = jax.block_until_ready(loss)

    ref = _reference_loss(logits, targets, node_dist, area_dist, node_to_area)
    assert jnp.allclose(loss, ref, rtol=1e-3, atol=1e-3), (loss, ref)

    print("KERNEL_OK")
</pallas_src>

<mosaic_0001>
module attributes {stable_mosaic.version = 11 : i64} {
  func.func @_loss_kernel(%arg0: i32, %arg1: memref<8x22xf32, #tpu.memory_space<vmem>>, %arg2: memref<8x1xi32, #tpu.memory_space<vmem>>, %arg3: memref<22x22xf32, #tpu.memory_space<vmem>>, %arg4: memref<1x1x1xf32, #tpu.memory_space<vmem>>) attributes {dimension_semantics = [#tpu.dimension_semantics<parallel>], iteration_bounds = array<i64: 2>, scalar_prefetch = 0 : i64, scratch_operands = 0 : i64, tpu.core_type = #tpu.core_type<tc>, window_params = [{transform_indices = @transform_0, window_bounds = array<i64: 8, 22>}, {transform_indices = @transform_1, window_bounds = array<i64: 8, 1>}, {pipeline_mode = #tpu.pipeline_mode<synchronous>, transform_indices = @transform_2, window_bounds = array<i64: 22, 22>}, {transform_indices = @transform_3, window_bounds = array<i64: 1, 1, 1>}]} {
    %c0 = arith.constant 0 : index
    %c0_0 = arith.constant 0 : index
    %0 = vector.load %arg1[%c0, %c0_0] : memref<8x22xf32, #tpu.memory_space<vmem>>, vector<8x22xf32>
    %c0_1 = arith.constant 0 : index
    %c0_2 = arith.constant 0 : index
    %1 = vector.load %arg2[%c0_1, %c0_2] : memref<8x1xi32, #tpu.memory_space<vmem>>, vector<8x1xi32>
    %c0_3 = arith.constant 0 : index
    %c0_4 = arith.constant 0 : index
    %2 = vector.load %arg3[%c0_3, %c0_4] : memref<22x22xf32, #tpu.memory_space<vmem>>, vector<22x22xf32>
    %c8_i32 = arith.constant 8 : i32
    %3 = arith.muli %arg0, %c8_i32 : i32
    %4 = tpu.iota {dimensions = array<i32: 0>} : vector<8x1xi32>
    %5 = vector.broadcast %3 : i32 to vector<8x1xi32>
    %6 = arith.addi %4, %5 : vector<8x1xi32>
    %c16_i32 = arith.constant 16 : i32
    %7 = vector.broadcast %c16_i32 : i32 to vector<8x1xi32>
    %8 = arith.cmpi slt, %6, %7 : vector<8x1xi32>
    %9 = tpu.iota {dimensions = array<i32: 1>} : vector<8x22xi32>
    %10 = vector.broadcast %1 : vector<8x1xi32> to vector<8x22xi32>
    %11 = arith.cmpi eq, %9, %10 : vector<8x22xi32>
    %12 = vector.broadcast %8 : vector<8x1xi1> to vector<8x22xi1>
    %13 = arith.andi %11, %12 : vector<8x22xi1>
    %cst = arith.constant 1.000000e+00 : f32
    %cst_5 = arith.constant 0.000000e+00 : f32
    %14 = vector.broadcast %cst : f32 to vector<8x22xf32>
    %15 = vector.broadcast %cst_5 : f32 to vector<8x22xf32>
    %16 = arith.select %13, %14, %15 : vector<8x22xi1>, vector<8x22xf32>
    %cst_6 = arith.constant dense<0xFF800000> : vector<8xf32>
    %17 = vector.multi_reduction <maximumf>, %0, %cst_6 [1] : vector<8x22xf32> to vector<8xf32>
    %18 = vector.shape_cast %17 : vector<8xf32> to vector<8x1xf32>
    %19 = vector.broadcast %18 : vector<8x1xf32> to vector<8x22xf32>
    %20 = arith.subf %0, %19 : vector<8x22xf32>
    %21 = math.exp %20 : vector<8x22xf32>
    %cst_7 = arith.constant dense<0.000000e+00> : vector<8xf32>
    %22 = vector.multi_reduction <add>, %21, %cst_7 [1] : vector<8x22xf32> to vector<8xf32>
    %23 = vector.shape_cast %22 : vector<8xf32> to vector<8x1xf32>
    %24 = tpu.reciprocal %23 {approx = true} : vector<8x1xf32> -> vector<8x1xf32>
    %25 = vector.broadcast %24 : vector<8x1xf32> to vector<8x22xf32>
    %26 = arith.mulf %21, %25 : vector<8x22xf32>
    %cst_8 = arith.constant dense<0.000000e+00> : vector<22x22xf32>
    %27 = tpu.matmul %16, %26, %cst_8 {dimension_numbers = #tpu.dot_dimension_numbers<[0], [0], [1], [1], [0, 1, 1, 1], [], []>} : vector<8x22xf32>, vector<8x22xf32>, vector<22x22xf32> -> vector<22x22xf32>
    %28 = arith.mulf %27, %2 : vector<22x22xf32>
    %29 = vector.shape_cast %28 : vector<22x22xf32> to vector<1x22x22xf32>
    %cst_9 = arith.constant dense<0.000000e+00> : vector<1xf32>
    %30 = vector.multi_reduction <add>, %29, %cst_9 [1, 2] : vector<1x22x22xf32> to vector<1xf32>
    %31 = vector.shape_cast %30 : vector<1xf32> to vector<1x1x1xf32>
    %32 = vector.extract %31[0, 0, 0] : f32 from vector<1x1x1xf32>
    %33 = arith.mulf %16, %0 : vector<8x22xf32>
    %34 = vector.shape_cast %33 : vector<8x22xf32> to vector<1x8x22xf32>
    %cst_10 = arith.constant dense<0.000000e+00> : vector<1xf32>
    %35 = vector.multi_reduction <add>, %34, %cst_10 [1, 2] : vector<1x8x22xf32> to vector<1xf32>
    %36 = vector.shape_cast %35 : vector<1xf32> to vector<1x1x1xf32>
    %37 = vector.extract %36[0, 0, 0] : f32 from vector<1x1x1xf32>
    %38 = math.log %23 : vector<8x1xf32>
    %39 = arith.addf %38, %18 : vector<8x1xf32>
    %cst_11 = arith.constant 0.000000e+00 : f32
    %40 = vector.broadcast %cst_11 : f32 to vector<8x1xf32>
    %41 = arith.select %8, %39, %40 : vector<8x1xi1>, vector<8x1xf32>
    %42 = vector.shape_cast %41 : vector<8x1xf32> to vector<1x8x1xf32>
    %cst_12 = arith.constant dense<0.000000e+00> : vector<1xf32>
    %43 = vector.multi_reduction <add>, %42, %cst_12 [1, 2] : vector<1x8x1xf32> to vector<1xf32>
    %44 = vector.shape_cast %43 : vector<1xf32> to vector<1x1x1xf32>
    %45 = vector.extract %44[0, 0, 0] : f32 from vector<1x1x1xf32>
    %46 = arith.subf %45, %37 : f32
    %47 = arith.addf %46, %32 : f32
    %48 = vector.broadcast %47 : f32 to vector<1x1x1xf32>
    %c0_13 = arith.constant 0 : index
    %c0_14 = arith.constant 0 : index
    %c0_15 = arith.constant 0 : index
    %49 = vector.load %arg4[%c0_13, %c0_14, %c0_15] : memref<1x1x1xf32, #tpu.memory_space<vmem>>, vector<1x1x1xf32>
    tpu.vector_store %arg4[%c0_13, %c0_14, %c0_15], %48 {strides = array<i32>} : memref<1x1x1xf32, #tpu.memory_space<vmem>>, vector<1x1x1xf32>,
    return
  }
  func.func @transform_0(%arg0: i32) -> (i32, i32) {
    %c0_i32 = arith.constant 0 : i32
    %c0_i32_0 = arith.constant 0 : i32
    return %arg0, %c0_i32 : i32, i32
  }
  func.func @transform_1(%arg0: i32) -> (i32, i32) {
    %c0_i32 = arith.constant 0 : i32
    %c0_i32_0 = arith.constant 0 : i32
    return %arg0, %c0_i32 : i32, i32
  }
  func.func @transform_2(%arg0: i32) -> (i32, i32) {
    %c0_i32 = arith.constant 0 : i32
    %c0_i32_0 = arith.constant 0 : i32
    %c0_i32_1 = arith.constant 0 : i32
    return %c0_i32, %c0_i32_0 : i32, i32
  }
  func.func @transform_3(%arg0: i32) -> (i32, i32, i32) {
    %c0_i32 = arith.constant 0 : i32
    %c0_i32_0 = arith.constant 0 : i32
    %c0_i32_1 = arith.constant 0 : i32
    return %arg0, %c0_i32, %c0_i32_0 : i32, i32, i32
  }
}

</mosaic_0001>

<llo_original>
// kernel: tpu_custom_call.1
$region0: #{tpu_custom_call.1}
  #allocation0 [shape = 'u32[]', space=smem, size = 0x4, offset = 0x4, fixed_abs, tag = 'smem constant byte address 0x4 - core index']
  #allocation1 [shape = 'u32[144,128]{1,0:T(1,128)}', space=vmem, size = 0x12000, scoped, tag = 'internal scratch']
  %s0 = inlined_call_operand.hbm [shape: f32[16,22], index: 0, kind: input, shape index: {}]
  %s1 = inlined_call_operand.vmem [shape: s32[16,1], index: 1, kind: input, shape index: {}]
  %s2 = inlined_call_operand.vmem [shape: f32[22,22], index: 2, kind: input, shape index: {}]
  %s3 = inlined_call_operand.vmem [shape: f32[2,1,1], index: 3, kind: output, shape index: {}]
  %s4 = sld [smem:[#allocation0]]
  $region49: #{tpu_custom_call.1} parent=0
    _
  %s6 = ssub.s32 1, %s4
  %s7 = scalar_select 0, %s6, %s4
  $region1: #{tpu_custom_call.1} parent=0
    #allocation2 [shape = 'u8[8192]{0}', space=vmem, size = 0x2000, scoped, tag = 'input window, operand 0']
    #allocation3 [shape = 's32[2]{0}', space=sflag, size = 0x8, scoped, tag = 'scoped memory for tpu_custom_call.1']
    %8 = vsyncpa [#allocation3], 0
    %s9 = scalar_lea.sflag [#allocation3], 1
    %10 = vsyncpa %s9, 0
    loop: start=0, step=1, limit=4
    $region2: #{tpu_custom_call.1} parent=1 // loop_pre_header
      _
    $region3: #{tpu_custom_call.1} parent=1 // loop_header
      %s12 = sphi 0, %s16
      %p13 = scmp.ge.s32.totalorder %s12, 4
      %s22 = sphi 0, %s24
      %s25 = sphi 0, %s22
      %s26 = sphi 0, %s25
      %s42 = sphi 0, %s26
      %s48 = sphi 0, %s50
      %s51 = sphi 0, %s48
      %s52 = sphi 0, %s51
      %s68 = sphi 0, %s52
      %s72 = sphi 0, %s72
      %s74 = sphi 0, %s72
      %s75 = sphi 0, %s74
      %s89 = sphi 0, %s75
      %s95 = sphi 0, %s97
      %s98 = sphi 0, %s95
      %s99 = sphi 0, %s98
      %s115 = sphi 0, %s99
    $region4: #{tpu_custom_call.1} parent=1 // loop_header_branch
      %15 = sbr.rel (%p13) target = $region8
    $region5: #{tpu_custom_call.1} parent=1 // loop_body
      %s17 = ssub.s32 %s12, 1
      %s18 = ssub.s32 %s12, 2
      %s19 = sadd.s32 %s12, 1
      %s20 = ssub.s32 %s12, %s19
      %p21 = scmp.eq.s32.totalorder %s20, 0
      %s23 = sadd.s32 %s22, 1
      %s24 = scalar_select %p21, %s22, %s23
      %p27 = pneg %p21
      %p28 = scmp.eq.s32.totalorder %s12, 1
      %p29 = por %p27, %p28
      %p30 = scmp.ne.s32.totalorder %s22, %s25
      %p31 = scmp.eq.s32.totalorder %s12, 0
      %p32 = por %p30, %p31
      %p33 = scmp.ne.s32.totalorder %s22, %s25
      %p34 = scmp.eq.s32.totalorder %s17, 1
      %p35 = por %p33, %p34
      %p36 = scmp.ne.s32.totalorder %s25, %s26
      %p37 = scmp.eq.s32.totalorder %s17, 0
      %p38 = por %p36, %p37
      %p39 = scmp.ne.s32.totalorder %s25, %s26
      %p40 = scmp.eq.s32.totalorder %s18, 1
      %p41 = por %p39, %p40
      %p43 = scmp.ne.s32.totalorder %s26, %s42
      %p44 = scmp.eq.s32.totalorder %s18, 0
      %p45 = por %p43, %p44
      %s46 = ssub.s32 %s12, %s19
      %p47 = scmp.eq.s32.totalorder %s46, 0
      %s49 = sadd.s32 %s48, 1
      %s50 = scalar_select %p47, %s48, %s49
      %p53 = pneg %p47
      %p54 = scmp.eq.s32.totalorder %s12, 1
      %p55 = por %p53, %p54
      %p56 = scmp.ne.s32.totalorder %s48, %s51
      %p57 = scmp.eq.s32.totalorder %s12, 0
      %p58 = por %p56, %p57
      %p59 = scmp.ne.s32.totalorder %s48, %s51
      %p60 = scmp.eq.s32.totalorder %s17, 1
      %p61 = por %p59, %p60
      %p62 = scmp.ne.s32.totalorder %s51, %s52
      %p63 = scmp.eq.s32.totalorder %s17, 0
      %p64 = por %p62, %p63
      %p65 = scmp.ne.s32.totalorder %s51, %s52
      %p66 = scmp.eq.s32.totalorder %s18, 1
      %p67 = por %p65, %p66
      %p69 = scmp.ne.s32.totalorder %s52, %s68
      %p70 = scmp.eq.s32.totalorder %s18, 0
      %p71 = por %p69, %p70
      %s73 = sadd.s32 %s72, 1
      %p76 = scmp.eq.s32.totalorder %s12, 1
      %p77 = scmp.ne.s32.totalorder %s72, %s74
      %p78 = scmp.eq.s32.totalorder %s12, 0
      %p79 = por %p77, %p78
      %p80 = scmp.ne.s32.totalorder %s72, %s74
      %p81 = scmp.eq.s32.totalorder %s17, 1
      %p82 = por %p80, %p81
      %p83 = scmp.ne.s32.totalorder %s74, %s75
      %p84 = scmp.eq.s32.totalorder %s17, 0
      %p85 = por %p83, %p84
      %p86 = scmp.ne.s32.totalorder %s74, %s75
      %p87 = scmp.eq.s32.totalorder %s18, 1
      %p88 = por %p86, %p87
      %p90 = scmp.ne.s32.totalorder %s75, %s89
      %p91 = scmp.eq.s32.totalorder %s18, 0
      %p92 = por %p90, %p91
      %s93 = ssub.s32 %s12, %s19
      %p94 = scmp.eq.s32.totalorder %s93, 0
      %s96 = sadd.s32 %s95, 1
      %s97 = scalar_select %p94, %s95, %s96
      %p100 = pneg %p94
      %p101 = scmp.eq.s32.totalorder %s12, 1
      %p102 = por %p100, %p101
      %p103 = scmp.ne.s32.totalorder %s95, %s98
      %p104 = scmp.eq.s32.totalorder %s12, 0
      %p105 = por %p103, %p104
      %p106 = scmp.ne.s32.totalorder %s95, %s98
      %p107 = scmp.eq.s32.totalorder %s17, 1
      %p108 = por %p106, %p107
      %p109 = scmp.ne.s32.totalorder %s98, %s99
      %p110 = scmp.eq.s32.totalorder %s17, 0
      %p111 = por %p109, %p110
      %p112 = scmp.ne.s32.totalorder %s98, %s99
      %p113 = scmp.eq.s32.totalorder %s18, 1
      %p114 = por %p112, %p113
      %p116 = scmp.ne.s32.totalorder %s99, %s115
      %p117 = scmp.eq.s32.totalorder %s18, 0
      %p118 = por %p116, %p117
      %p119 = scmp.le.s32.totalorder 1, %s12
      %p120 = scmp.lt.s32.totalorder %s12, 3
      %p121 = pnand %p119, %p120
      %p122 = pneg %p121
      // Predicated region
      $region9: #{tpu_custom_call.1} parent=5 // pred_check
        _
      $region10: #{tpu_custom_call.1} parent=5 // pred_check_branch
        %124 = sbr.rel (%p121) target = $region12
      $region11: #{tpu_custom_call.1} parent=5 // pred_region
        %s125 = ssub.s32 %s12, 1
        // Predicated region
        $region13: #{tpu_custom_call.1} parent=11 // pred_check
          %p126 = pneg %p85
        $region14: #{tpu_custom_call.1} parent=11 // pred_check_branch
          %128 = sbr.rel (%p126) target = $region16
        $region15: #{tpu_custom_call.1} parent=11 // pred_region
          _
        $region16: #{tpu_custom_call.1} parent=11 // pred_fallthru
          _
      $region12: #{tpu_custom_call.1} parent=5 // pred_fallthru
        _
      %p129 = scmp.lt.s32.totalorder %s12, 2
      // Predicated region
      $region17: #{tpu_custom_call.1} parent=5 // pred_check
        %p130 = pneg %p129
      $region18: #{tpu_custom_call.1} parent=5 // pred_check_branch
        %132 = sbr.rel (%p130) target = $region20
      $region19: #{tpu_custom_call.1} parent=5 // pred_region
        // Predicated region
        $region21: #{tpu_custom_call.1} parent=19 // pred_check
          %p133 = pneg %p32
        $region22: #{tpu_custom_call.1} parent=19 // pred_check_branch
          %135 = sbr.rel (%p133) target = $region24
        $region23: #{tpu_custom_call.1} parent=19 // pred_region
          %s136 = sand.u32 %s22, 1
          %s137 = scalar_lea.sflag [#allocation3], %s136
          %s138 = sand.u32 %s22, 1
          %s139 = smul.addr %s138, 8
          %s140 = scalar_lea.vmem [#allocation2], %s139
          %s142 = ssub.s32 128, 128
          %143 = vsyncadd %s137, %s142
          %s144 = smul.addr %s12, 128
          %s145 = scalar_lea.hbm %s0, %s144
          %s147 = sshll.u32 %s140, 4
          %s148 = int_to_ptr.vmem [resolvable:$true] %s147
          %150 = dma.hbm_to_vmem [thread:$0]  %s145, 128, %s148, %s137
        $region24: #{tpu_custom_call.1} parent=19 // pred_fallthru
          _
        // Predicated region
        $region25: #{tpu_custom_call.1} parent=19 // pred_check
          %p151 = pneg %p58
        $region26: #{tpu_custom_call.1} parent=19 // pred_check_branch
          %153 = sbr.rel (%p151) target = $region28
        $region27: #{tpu_custom_call.1} parent=19 // pred_region
          %p154 = scmp.lt.s32.totalorder %s12, 1
          %s155 = scalar_select %p154, %s12, 1
          %s156 = smul.addr %s155, 8
          %s157 = scalar_lea.vmem %s1, %s156
        $region28: #{tpu_custom_call.1} parent=19 // pred_fallthru
          _
      $region20: #{tpu_custom_call.1} parent=5 // pred_fallthru
        _
      %p158 = scmp.le.s32.totalorder 1, %s12
      %p159 = scmp.lt.s32.totalorder %s12, 3
      %p160 = pnand %p158, %p159
      %p161 = pneg %p160
      // Predicated region
      $region29: #{tpu_custom_call.1} parent=5 // pred_check
        _
      $region30: #{tpu_custom_call.1} parent=5 // pred_check_branch
        %163 = sbr.rel (%p160) target = $region32
      $region31: #{tpu_custom_call.1} parent=5 // pred_region
        %s164 = ssub.s32 %s12, 1
        %s165 = sand.u32 %s25, 1
        %s166 = scalar_lea.sflag [#allocation3], %s165
        %s167 = sand.u32 %s25, 1
        %s168 = smul.addr %s167, 8
        %s169 = scalar_lea.vmem [#allocation2], %s168
        // Predicated region
        $region33: #{tpu_custom_call.1} parent=31 // pred_check
          %p170 = pneg %p38
        $region34: #{tpu_custom_call.1} parent=31 // pred_check_branch
          %172 = sbr.rel (%p170) target = $region36
        $region35: #{tpu_custom_call.1} parent=31 // pred_region
          %173 = dma.done %s166, 128
        $region36: #{tpu_custom_call.1} parent=31 // pred_fallthru
          _
        %s174 = sand.u32 %s25, 1
        %s175 = scalar_lea.sflag [#allocation3], %s174
        %s176 = sand.u32 %s25, 1
        %s177 = smul.addr %s176, 8
        %s178 = scalar_lea.vmem [#allocation2], %s177
        %p179 = pneg %p38
        %p180 = pneg %p35
        %p181 = scmp.lt.s32.totalorder %s17, 1
        %s182 = scalar_select %p181, %s17, 1
        %s183 = smul.addr %s182, 8
        %s184 = scalar_lea.vmem %s1, %s183
        %p185 = pneg %p64
        %p186 = pneg %p61
        %p187 = pneg %p85
        %p188 = pneg %p82
        %p189 = pneg %p111
        %p190 = pneg %p108
        %p191 = scmp.lt.s32.totalorder %s17, 1
        %s192 = scalar_select %p191, %s17, 1
        %s193 = scalar_lea.vmem %s3, %s192
        %p194 = scmp.lt.s32.totalorder %s17, 1
        %s195 = scalar_select %p194, %s17, 1
        %s196 = smul.addr %s195, 8
        %s197 = scalar_lea.vmem %s1, %s196
        %p198 = scmp.lt.s32.totalorder %s17, 1
        %s199 = scalar_select %p198, %s17, 1
        %s200 = scalar_lea.vmem %s3, %s199
        %v201 = vld [vmem:[%s169] sm:$0xff]
        %v202 = vld [vmem:[%s197] sm:$0xff]
        %v203 = vld [vmem:[%s2] sm:$0xff]
        %v204 = vld [vmem:[%s2 + $0x8] sm:$0xff]
        %v205 = vld [vmem:[%s2 + $0x10] sm:$0x3f]
        %s206 = smul.u32 %s17, 8
        %v207 = vlaneseq
        %v208 = vshrl.u32 %v207, 7
        %v209 = vstv %s206
        %v210 = vadd.s32 %v208, %v209
        %vm211 = vcmp.lt.s32.totalorder %v210, 16
        %v212 = vlaneseq
        %v213 = vand.u32 %v212, 127
        %214 = vset.pattern.permute.xlu0 0
        %215 = vperm.xlu0 %214, %v202
        %v216 = vpop.permute.xlu0 %215
        %vm217 = vcmp.eq.s32.totalorder %v213, %v216
        %v218 = vsel %vm211, 1, 0
        %vm219 = vcmp.eq.s32.totalorder %v218, 1
        %vm220 = vmand %vm217, %vm219
        %v221 = vsel %vm220, 1.0, 0.0
        %vm222 = vcmask 179200
        %v223 = vsel %vm222, %v201, -inf
        %224 = vmax.xlane.f32.xlu0 %v223
        %v225 = vpop.xlane.xlu0 %224
        %v226 = vsub.f32 %v201, %v225
        %v227 = vmul.f32 %v226, 1.442695
        %v228 = vpow.pop %v227
        %v229 = vsel %vm222, %v228, 0.0
        %230 = vadd.xlane.f32.xlu0 %v229
        %v231 = vpop.xlane.xlu0 %230
        %v232 = vrcp.pop %v231
        %v233 = vmul.f32 %v228, %v232
        %234 = vxpose.xlu0.b32.start [1/16] %v221, 128
        %235 = vxpose.xlu0.b32.cont [2/16] 0.0, 128
        %236 = vxpose.xlu0.b32.cont [3/16] 0.0, 128
        %237 = vxpose.xlu0.b32.cont [4/16] 0.0, 128
        %238 = vxpose.xlu0.b32.cont [5/16] 0.0, 128
        %239 = vxpose.xlu0.b32.cont [6/16] 0.0, 128
        %240 = vxpose.xlu0.b32.cont [7/16] 0.0, 128
        %241 = vxpose.xlu0.b32.cont [8/16] 0.0, 128
        %242 = vxpose.xlu0.b32.cont [9/16] 0.0, 128
        %243 = vxpose.xlu0.b32.cont [10/16] 0.0, 128
        %244 = vxpose.xlu0.b32.cont [11/16] 0.0, 128
        %245 = vxpose.xlu0.b32.cont [12/16] 0.0, 128
        %246 = vxpose.xlu0.b32.cont [13/16] 0.0, 128
        %247 = vxpose.xlu0.b32.cont [14/16] 0.0, 128
        %248 = vxpose.xlu0.b32.cont [15/16] 0.0, 128
        %249 = vxpose.xlu0.b32.end [16/16] 0.0, 128
        %v250 = vpop.trf.xlu0
        %v251 = vpop.trf.xlu0
        %v252 = vpop.trf.xlu0
        %v253 = vpop.trf.xlu0
        %v254 = vpop.trf.xlu0
        %v255 = vpop.trf.xlu0
        %v256 = vpop.trf.xlu0
        %v257 = vpop.trf.xlu0
        %v258 = vpop.trf.xlu0
        %v259 = vpop.trf.xlu0
        %v260 = vpop.trf.xlu0
        %v261 = vpop.trf.xlu0
        %v262 = vpop.trf.xlu0
        %v263 = vpop.trf.xlu0
        %v264 = vpop.trf.xlu0
        %v265 = vpop.trf.xlu0
        %vm266 = vcmask 64512
        %v268 = vsel %vm266, %v250, 0
        %v271 = vsel %vm266, %v251, 0
        %v274 = vsel %vm266, %v252, 0
        %276 = vmatprep.subr.mxu0 0.0
        %277 = vmatpush1.msra.mxu0 %v233
        %278 = vmatprep.subr.mxu0 0.0
        %279 = vmatpush1.msra.mxu0 0.0
        %280 = vmatprep.subr.mxu0 0.0
        %281 = vmatpush1.msra.mxu0 0.0
        %282 = vmatprep.subr.mxu0 0.0
        %283 = vmatpush1.msra.mxu0 0.0
        %284 = vmatprep.subr.mxu0 0.0
        %285 = vmatpush1.msra.mxu0 0.0
        %286 = vmatprep.subr.mxu0 0.0
        %287 = vmatpush1.msra.mxu0 0.0
        %288 = vmatprep.subr.mxu0 0.0
        %289 = vmatpush1.msra.mxu0 0.0
        %290 = vmatprep.subr.mxu0 0.0
        %291 = vmatpush1.msra.mxu0 0.0
        %292 = vmatprep.subr.mxu0 0.0
        %293 = vmatpush1.msra.mxu0 0.0
        %294 = vmatprep.subr.mxu0 0.0
        %295 = vmatpush1.msra.mxu0 0.0
        %296 = vmatprep.subr.mxu0 0.0
        %297 = vmatpush1.msra.mxu0 0.0
        %298 = vmatprep.subr.mxu0 0.0
        %299 = vmatpush1.msra.mxu0 0.0
        %300 = vmatprep.subr.mxu0 0.0
        %301 = vmatpush1.msra.mxu0 0.0
        %302 = vmatprep.subr.mxu0 0.0
        %303 = vmatpush1.msra.mxu0 0.0
        %304 = vmatprep.subr.mxu0 0.0
        %305 = vmatpush1.msra.mxu0 0.0
        %306 = vmatprep.subr.mxu0 0.0
        %307 = vmatpush1.msra.mxu0 0.0
        %308 = vmatprep.subr.mxu0 0.0
        %309 = vmatpush1.msra.mxu0 0.0
        %310 = vmatprep.subr.mxu0 0.0
        %311 = vmatpush1.msra.mxu0 0.0
        %312 = vmatprep.subr.mxu0 0.0
        %313 = vmatpush1.msra.mxu0 0.0
        %314 = vmatprep.subr.mxu0 0.0
        %315 = vmatpush1.msra.mxu0 0.0
        %316 = vmatprep.subr.mxu0 0.0
        %317 = vmatpush1.msra.mxu0 0.0
        %318 = vmatprep.subr.mxu0 0.0
        %319 = vmatpush1.msra.mxu0 0.0
        %320 = vmatprep.subr.mxu0 0.0
        %321 = vmatpush1.msra.mxu0 0.0
        %322 = vmatprep.subr.mxu0 0.0
        %323 = vmatpush1.msra.mxu0 0.0
        %324 = vmatprep.subr.mxu0 0.0
        %325 = vmatpush1.msra.mxu0 0.0
        %326 = vmatprep.subr.mxu0 0.0
        %327 = vmatpush1.msra.mxu0 0.0
        %328 = vmatprep.subr.mxu0 0.0
        %329 = vmatpush1.msra.mxu0 0.0
        %330 = vmatprep.subr.mxu0 0.0
        %331 = vmatpush1.msra.mxu0 0.0
        %332 = vmatprep.subr.mxu0 0.0
        %333 = vmatpush1.msra.mxu0 0.0
        %334 = vmatprep.subr.mxu0 0.0
        %335 = vmatpush1.msra.mxu0 0.0
        %336 = vmatprep.subr.mxu0 0.0
        %337 = vmatpush1.msra.mxu0 0.0
        %338 = vmatprep.subr.mxu0 0.0
        %339 = vmatpush1.msra.mxu0 0.0
        %340 = vmatprep.mubr.f32.mxu0 0.0
        %341 = vmatmul.mubr.f32.gmra.mrb[0].mxu0 %v268
        %v342 = vpop.f32.mrb[0].mxu0
        %v343 = vadd.f32 0.0, %v342
        %v344 = vpop.f32.mrb[0].mxu0
        %345 = vmatprep.mubr.f32.mxu0 0.0
        %346 = vmatmul.mubr.f32.gmra.mrb[0].mxu0 %v271
        %v347 = vpop.f32.mrb[0].mxu0
        %v348 = vadd.f32 0.0, %v347
        %v349 = vpop.f32.mrb[0].mxu0
        %350 = vmatprep.mubr.f32.mxu0 0.0
        %351 = vmatmul.mubr.f32.gmra.mrb[0].mxu0 %v274
        %v352 = vpop.f32.mrb[0].mxu0
        %v353 = vadd.f32 0.0, %v352
        %v354 = vpop.f32.mrb[0].mxu0
        %355 = vdwg.mxu0
        %v356 = vmul.f32 %v343, %v203
        %v357 = vmul.f32 %v348, %v204
        %v358 = vmul.f32 %v353, %v205
        %v359 = vsel %vm222, %v356, 0.0
        %v360 = vsel %vm222, %v357, 0.0
        %v361 = vadd.f32 %v359, %v360
        %vm362 = vcmask 177152
        %v363 = vsel %vm362, %v358, 0.0
        %v364 = vadd.f32 %v361, %v363
        %365 = vadd.xlane.f32.xlu0 %v364
        %v366 = vpop.xlane.xlu0 %365
        %v367 = vrot.slane %v366, 4
        %v368 = vadd.f32 %v366, %v367
        %v369 = vrot.slane %v368, 2
        %v370 = vadd.f32 %v368, %v369
        %v371 = vrot.slane %v370, 1
        %v372 = vadd.f32 %v370, %v371
        %s373 = vtos %v372
        %v374 = vmul.f32 %v221, %v201
        %v375 = vsel %vm222, %v374, 0.0
        %376 = vadd.xlane.f32.xlu0 %v375
        %v377 = vpop.xlane.xlu0 %376
        %v378 = vrot.slane %v377, 4
        %v379 = vadd.f32 %v377, %v378
        %v380 = vrot.slane %v379, 2
        %v381 = vadd.f32 %v379, %v380
        %v382 = vrot.slane %v381, 1
        %v383 = vadd.f32 %v381, %v382
        %s384 = vtos %v383
        %v385 = vlog2.pop %v231
        %v386 = vmul.f32 %v385, 0.6931472
        %v387 = vadd.f32 %v386, %v225
        %v388 = vsel %vm211, %v387, 0.0
        %vm389 = vcmask 7168
        %v390 = vsel %vm389, %v388, 0.0
        %391 = vadd.xlane.f32.xlu0 %v390
        %v392 = vpop.xlane.xlu0 %391
        %v393 = vrot.slane %v392, 4
        %v394 = vadd.f32 %v392, %v393
        %v395 = vrot.slane %v394, 2
        %v396 = vadd.f32 %v394, %v395
        %v397 = vrot.slane %v396, 1
        %v398 = vadd.f32 %v396, %v397
        %s399 = vtos %v398
        %s400 = ssub.f32 %s399, %s384
        %s401 = sadd.f32 %s400, %s373
        %v402 = vstv %s401
        %vm403 = vcmask 0
        %404 = vst.msk [vmem:[%s200] sm:$0x1] %vm403, %v402
        %p405 = scmp.lt.s32.totalorder %s17, 1
        %s406 = scalar_select %p405, %s17, 1
        %s407 = scalar_lea.vmem %s3, %s406
        // Predicated region
        $region37: #{tpu_custom_call.1} parent=31 // pred_check
          %p408 = pneg %p108
        $region38: #{tpu_custom_call.1} parent=31 // pred_check_branch
          %410 = sbr.rel (%p408) target = $region40
        $region39: #{tpu_custom_call.1} parent=31 // pred_region
          _
        $region40: #{tpu_custom_call.1} parent=31 // pred_fallthru
          _
      $region32: #{tpu_custom_call.1} parent=5 // pred_fallthru
        _
      %p411 = scmp.le.s32.totalorder 2, %s12
      // Predicated region
      $region41: #{tpu_custom_call.1} parent=5 // pred_check
        %p412 = pneg %p411
      $region42: #{tpu_custom_call.1} parent=5 // pred_check_branch
        %414 = sbr.rel (%p412) target = $region44
      $region43: #{tpu_custom_call.1} parent=5 // pred_region
        %s415 = ssub.s32 %s12, 2
        // Predicated region
        $region45: #{tpu_custom_call.1} parent=43 // pred_check
          %p416 = pneg %p114
        $region46: #{tpu_custom_call.1} parent=43 // pred_check_branch
          %418 = sbr.rel (%p416) target = $region48
        $region47: #{tpu_custom_call.1} parent=43 // pred_region
          %p419 = scmp.lt.s32.totalorder %s18, 1
          %s420 = scalar_select %p419, %s18, 1
          %s421 = scalar_lea.vmem %s3, %s420
        $region48: #{tpu_custom_call.1} parent=43 // pred_fallthru
          _
      $region44: #{tpu_custom_call.1} parent=5 // pred_fallthru
        _
    $region6: #{tpu_custom_call.1} parent=1 // loop_footer
      %s16 = sadd.s32 1, %s12
    $region7: #{tpu_custom_call.1} parent=1 // loop_footer_branch
      %11 = sbr.rel target = $region3
    $region8: #{tpu_custom_call.1} parent=1 // loop_exit
      _
    %422 = vsyncpa [#allocation3], 1
    %s423 = scalar_lea.sflag [#allocation3], 1
    %424 = vsyncpa %s423, 1

</llo_original>
